<compile_context>
chip_gen: v6e
topology: v6e:2x2x1
jax: 0.10.0
libtpu: 0.0.40
codegen_flags: <defaults>
</compile_context>

<pallas_src>
import jax
import jax.numpy as jnp
from jax import lax
from jax.experimental import pallas as pl
from jax.experimental.pallas import tpu as pltpu

_LANES = 128


def _ceil_to(x, m):
    return -(-x // m) * m


def _pick_max_block_bytes():
    """Generation-aware per-input block cap.  2 inputs x 2 pipeline buffers of
    this size must fit the 32 MiB scoped-VMEM budget requested below."""
    try:
        vmem_phys = pltpu.get_tpu_info().vmem_capacity_bytes
    except Exception:
        vmem_phys = 128 << 20
    if vmem_phys <= (64 << 20):      # v7x-class: 64 MiB physical VMEM
        return 6 << 20               # 2 x 2 x 6 MiB = 24 MiB < 32 MiB scoped
    return 4 << 20                   # v5e / v6e: 128 MiB physical VMEM


def _choose_tiling(rows, n_tasks, max_block_bytes):
    """Returns (block_rows, num_chunks_per_partition, n_partitions)."""
    row_bytes = n_tasks * _LANES * 4
    max_rows = max(32, (max_block_bytes // row_bytes) // 32 * 32)
    if rows <= max_rows:
        return _ceil_to(rows, 8), 1, 1
    chunks_total = -(-rows // max_rows)
    n_parts = 2 if chunks_total >= 4 else 1          # megacore split (v7x: 2 TCs)
    chunks_total = _ceil_to(chunks_total, n_parts)
    # Smallest multiple-of-32 block that covers rows in chunks_total chunks
    # (minimizes zero padding while keeping blocks under the cap).
    block_rows = _ceil_to(-(-rows // chunks_total), 32)
    return block_rows, chunks_total // n_parts, n_parts


def _make_kernel(n_tasks, block_rows, acc_rows, lanes):
    """One grid step = one row-chunk holding ALL tasks.

    Kernel refs:
      pred_ref : VMEM (n_tasks, block_rows, lanes) f32
      true_ref : VMEM (n_tasks, block_rows, lanes) f32
      out_ref  : VMEM (1, n_tasks, acc_rows, lanes) f32 — per-partition partial
                 sums, resident across the chunk ("arbitrary") grid axis.
    """
    n_fold = block_rows // acc_rows  # static

    def kernel(pred_ref, true_ref, out_ref):
        k = pl.program_id(1)

        @pl.when(k == 0)
        def _init():
            out_ref[...] = jnp.zeros_like(out_ref)

        if n_fold == 1:
            d = pred_ref[...] - true_ref[...]
            acc = d * d
        else:
            def body(j, acc):
                i = pl.multiple_of(j * acc_rows, acc_rows)
                p = pred_ref[:, pl.ds(i, acc_rows), :]
                t = true_ref[:, pl.ds(i, acc_rows), :]
                d = p - t
                return acc + d * d

            acc = lax.fori_loop(
                0, n_fold, body,
                jnp.zeros((n_tasks, acc_rows, lanes), jnp.float32),
                unroll=min(8, n_fold))

        out_ref[...] += acc[None, ...]

    return kernel


def multitask_normal_loss(preds, trues, loss_weights, *, max_block_bytes=None):
    """preds, trues: (n_tasks, S, F); loss_weights: (n_tasks,).

    Returns (per_task_loss: (n_tasks,), total_loss: scalar)."""
    n_tasks, S, F = preds.shape
    n_elem = S * F

    rows = -(-n_elem // _LANES)
    mb = max_block_bytes if max_block_bytes is not None else _pick_max_block_bytes()
    block_rows, num_chunks, n_parts = _choose_tiling(rows, n_tasks, mb)
    acc_rows = 32 if block_rows % 32 == 0 else 8
    padded_rows = block_rows * num_chunks * n_parts
    padded_elems = padded_rows * _LANES

    def _prep(x):
        # Lane-dense, zero-padded slab (n_tasks, padded_rows, 128).  Zero
        # padding is exact for a squared-diff sum; 1/(S*F) uses the true count.
        x = x.reshape(n_tasks, n_elem).astype(jnp.float32)
        if padded_elems != n_elem:
            x = jnp.pad(x, ((0, 0), (0, padded_elems - n_elem)))
        return x.reshape(n_tasks, padded_rows, _LANES)

    p3 = _prep(preds)
    t3 = _prep(trues)

    partial = pl.pallas_call(
        _make_kernel(n_tasks, block_rows, acc_rows, _LANES),
        out_shape=jax.ShapeDtypeStruct((n_parts, n_tasks, acc_rows, _LANES),
                                       jnp.float32),
        grid_spec=pltpu.PrefetchScalarGridSpec(
            num_scalar_prefetch=0,
            grid=(n_parts, num_chunks),
            in_specs=[
                pl.BlockSpec((n_tasks, block_rows, _LANES),
                             lambda p, k: (0, p * num_chunks + k, 0)),
                pl.BlockSpec((n_tasks, block_rows, _LANES),
                             lambda p, k: (0, p * num_chunks + k, 0)),
            ],
            out_specs=pl.BlockSpec((1, n_tasks, acc_rows, _LANES),
                                   lambda p, k: (p, 0, 0, 0)),
        ),
        compiler_params=pltpu.CompilerParams(
            # Partition axis feeds each TensorCore its own row range (v7x);
            # the chunk axis carries the resident output accumulator.
            dimension_semantics=("parallel", "arbitrary"),
            vmem_limit_bytes=32 << 20,
        ),
    )(p3, t3)

    # Tiny finishing math in plain JAX: per-task sum of squares -> MSE -> weight.
    sq_sums = jnp.sum(partial, axis=(0, 2, 3))                        # (n_tasks,)
    per_task = loss_weights.astype(jnp.float32) * (sq_sums / jnp.float32(n_elem))
    total = jnp.sum(per_task)
    return per_task, total


def _check(preds, trues, loss_weights, **kw):
    per_task, total = multitask_normal_loss(preds, trues, loss_weights, **kw)
    jax.block_until_ready(total)
    ref_per_task = loss_weights * jnp.mean((preds - trues) ** 2, axis=(1, 2))
    ref_total = jnp.sum(ref_per_task)
    assert jnp.allclose(per_task, ref_per_task, rtol=1e-5, atol=1e-6), (
        per_task, ref_per_task)
    assert jnp.allclose(total, ref_total, rtol=1e-5, atol=1e-6), (total, ref_total)


if __name__ == "__main__":
    key = jax.random.PRNGKey(0)
    k_pred, k_true, k_sample = jax.random.split(key, 3)

    n_tasks = 4
    S, F = 8, 128  # each task: stack of 8 tensors, 128 features each

    preds = jax.random.normal(k_pred, (n_tasks, S, F), dtype=jnp.float32)
    trues = jax.random.normal(k_true, (n_tasks, S, F), dtype=jnp.float32)

    # Parameters as in __init__: mean = ones(n_tasks); std = 0.001 * ones.
    # Normal(mean, std).sample() + Softmax is tiny parameter-side glue done in
    # plain JAX (resampled per forward, matching the PyTorch module).
    mean = jnp.ones((n_tasks,), jnp.float32)
    std = 0.001 * jnp.ones((n_tasks,), jnp.float32)
    samples = mean + std * jax.random.normal(k_sample, (n_tasks,), jnp.float32)
    loss_weights = jax.nn.softmax(samples)

    # 1) Lane-aligned baseline shape.
    _check(preds, trues, loss_weights)

    # 2) Ragged shape (exercises the lane/row zero-padding path).
    p_r = jax.random.normal(jax.random.PRNGKey(1), (n_tasks, 5, 37), jnp.float32)
    t_r = jax.random.normal(jax.random.PRNGKey(2), (n_tasks, 5, 37), jnp.float32)
    _check(p_r, t_r, loss_weights)

    # 3) Larger block in one chunk (exercises the unrolled fori_loop fold).
    w2 = jax.nn.softmax(1.0 + 0.001 * jax.random.normal(
        jax.random.PRNGKey(3), (2,), jnp.float32))
    p_b = jax.random.normal(jax.random.PRNGKey(4), (2, 64, 256), jnp.float32)
    t_b = jax.random.normal(jax.random.PRNGKey(5), (2, 64, 256), jnp.float32)
    _check(p_b, t_b, w2)

    # 4) Same data with a tiny block cap (exercises multi-chunk accumulation
    #    across the "arbitrary" axis and the 2-partition "parallel" axis).
    _check(p_b, t_b, w2, max_block_bytes=32 * 1024)

    print("KERNEL_OK")
</pallas_src>

<mosaic_0001>
module attributes {stable_mosaic.version = 11 : i64} {
  func.func @kernel(%arg0: i32, %arg1: i32, %arg2: memref<4x8x128xf32, #tpu.memory_space<vmem>>, %arg3: memref<4x8x128xf32, #tpu.memory_space<vmem>>, %arg4: memref<1x4x8x128xf32, #tpu.memory_space<vmem>>) attributes {dimension_semantics = [#tpu.dimension_semantics<parallel>, #tpu.dimension_semantics<arbitrary>], iteration_bounds = array<i64: 1, 1>, scalar_prefetch = 0 : i64, scratch_operands = 0 : i64, tpu.core_type = #tpu.core_type<tc>, window_params = [{transform_indices = @transform_0, window_bounds = array<i64: 4, 8, 128>}, {transform_indices = @transform_1, window_bounds = array<i64: 4, 8, 128>}, {transform_indices = @transform_2, window_bounds = array<i64: 1, 4, 8, 128>}]} {
    %c0_i32 = arith.constant 0 : i32
    %0 = arith.cmpi eq, %arg1, %c0_i32 : i32
    %1 = arith.extui %0 : i1 to i32
    %c0_i32_0 = arith.constant 0 : i32
    %2 = arith.cmpi ne, %1, %c0_i32_0 : i32
    scf.if %2 {
      %cst = arith.constant 0.000000e+00 : f32
      %11 = vector.broadcast %cst : f32 to vector<1x4x8x128xf32>
      %c0_14 = arith.constant 0 : index
      %c0_15 = arith.constant 0 : index
      %c0_16 = arith.constant 0 : index
      %c0_17 = arith.constant 0 : index
      %12 = vector.load %arg4[%c0_14, %c0_15, %c0_16, %c0_17] : memref<1x4x8x128xf32, #tpu.memory_space<vmem>>, vector<1x4x8x128xf32>
      tpu.vector_store %arg4[%c0_14, %c0_15, %c0_16, %c0_17], %11 {strides = array<i32>} : memref<1x4x8x128xf32, #tpu.memory_space<vmem>>, vector<1x4x8x128xf32>,
    } else {
    }
    %c0 = arith.constant 0 : index
    %c0_1 = arith.constant 0 : index
    %c0_2 = arith.constant 0 : index
    %3 = vector.load %arg2[%c0, %c0_1, %c0_2] : memref<4x8x128xf32, #tpu.memory_space<vmem>>, vector<4x8x128xf32>
    %c0_3 = arith.constant 0 : index
    %c0_4 = arith.constant 0 : index
    %c0_5 = arith.constant 0 : index
    %4 = vector.load %arg3[%c0_3, %c0_4, %c0_5] : memref<4x8x128xf32, #tpu.memory_space<vmem>>, vector<4x8x128xf32>
    %5 = arith.subf %3, %4 : vector<4x8x128xf32>
    %6 = arith.mulf %5, %5 : vector<4x8x128xf32>
    %c0_6 = arith.constant 0 : index
    %c0_7 = arith.constant 0 : index
    %c0_8 = arith.constant 0 : index
    %c0_9 = arith.constant 0 : index
    %7 = vector.load %arg4[%c0_6, %c0_7, %c0_8, %c0_9] : memref<1x4x8x128xf32, #tpu.memory_space<vmem>>, vector<1x4x8x128xf32>
    %8 = vector.shape_cast %6 : vector<4x8x128xf32> to vector<1x4x8x128xf32>
    %9 = arith.addf %7, %8 : vector<1x4x8x128xf32>
    %c0_10 = arith.constant 0 : index
    %c0_11 = arith.constant 0 : index
    %c0_12 = arith.constant 0 : index
    %c0_13 = arith.constant 0 : index
    %10 = vector.load %arg4[%c0_10, %c0_11, %c0_12, %c0_13] : memref<1x4x8x128xf32, #tpu.memory_space<vmem>>, vector<1x4x8x128xf32>
    tpu.vector_store %arg4[%c0_10, %c0_11, %c0_12, %c0_13], %9 {strides = array<i32>} : memref<1x4x8x128xf32, #tpu.memory_space<vmem>>, vector<1x4x8x128xf32>,
    return
  }
  func.func @transform_0(%arg0: i32, %arg1: i32) -> (i32, i32, i32) {
    %c1_i32 = arith.constant 1 : i32
    %0 = arith.muli %arg0, %c1_i32 : i32
    %1 = arith.addi %0, %arg1 : i32
    %c0_i32 = arith.constant 0 : i32
    %c0_i32_0 = arith.constant 0 : i32
    %c0_i32_1 = arith.constant 0 : i32
    return %c0_i32, %1, %c0_i32_0 : i32, i32, i32
  }
  func.func @transform_1(%arg0: i32, %arg1: i32) -> (i32, i32, i32) {
    %c1_i32 = arith.constant 1 : i32
    %0 = arith.muli %arg0, %c1_i32 : i32
    %1 = arith.addi %0, %arg1 : i32
    %c0_i32 = arith.constant 0 : i32
    %c0_i32_0 = arith.constant 0 : i32
    %c0_i32_1 = arith.constant 0 : i32
    return %c0_i32, %1, %c0_i32_0 : i32, i32, i32
  }
  func.func @transform_2(%arg0: i32, %arg1: i32) -> (i32, i32, i32, i32) {
    %c0_i32 = arith.constant 0 : i32
    %c0_i32_0 = arith.constant 0 : i32
    %c0_i32_1 = arith.constant 0 : i32
    %c0_i32_2 = arith.constant 0 : i32
    return %arg0, %c0_i32, %c0_i32_0, %c0_i32_1 : i32, i32, i32, i32
  }
}

</mosaic_0001>

<llo_original>
// kernel: tpu_custom_call.1
$region0: #{tpu_custom_call.1}
  #allocation0 [shape = 'u32[]', space=smem, size = 0x4, offset = 0x4, fixed_abs, tag = 'smem constant byte address 0x4 - core index']
  #allocation1 [shape = 'u32[144,128]{1,0:T(1,128)}', space=vmem, size = 0x12000, scoped, tag = 'internal scratch']
  %s0 = inlined_call_operand.hbm [shape: f32[4,8,128], index: 0, kind: input, shape index: {}]
  %s1 = inlined_call_operand.hbm [shape: f32[4,8,128], index: 1, kind: input, shape index: {}]
  %s2 = inlined_call_operand.hbm [shape: f32[1,4,8,128], index: 2, kind: output, shape index: {}]
  %s3 = sld [smem:[#allocation0]]
  $region30: #{tpu_custom_call.1} parent=0
    _
  %s5 = ssub.s32 1, %s3
  %s6 = scalar_select 0, %s5, %s3
  $region1: #{tpu_custom_call.1} parent=0
    #allocation2 [shape = 'u8[16384]{0}', space=vmem, size = 0x4000, scoped, tag = 'input window, operand 0, single buffered']
    #allocation3 [shape = 's32[1]{0}', space=sflag, size = 0x4, scoped, tag = 'scoped memory for tpu_custom_call.1']
    #allocation4 [shape = 's32[1]{0}', space=sflag, size = 0x4, scoped, tag = 'scoped memory for tpu_custom_call.1']
    #allocation5 [shape = 'u8[16384]{0}', space=vmem, size = 0x4000, scoped, tag = 'input window, operand 1, single buffered']
    #allocation6 [shape = 's32[1]{0}', space=sflag, size = 0x4, scoped, tag = 'scoped memory for tpu_custom_call.1']
    #allocation7 [shape = 'u8[16384]{0}', space=vmem, size = 0x4000, scoped, tag = 'output window, operand 0, single buffered']
    %7 = vsyncpa [#allocation3], 0
    %8 = vsyncpa [#allocation6], 0
    %9 = vsyncpa [#allocation4], 0
    // Predicated region
    $region2: #{tpu_custom_call.1} parent=1 // pred_check
      _
    $region3: #{tpu_custom_call.1} parent=1 // pred_check_branch
      %11 = sbr.rel (0) target = $region5
    $region4: #{tpu_custom_call.1} parent=1 // pred_region
      %s12 = sadd.s32 0, 0
      %s14 = ssub.s32 512, 512
      %15 = vsyncadd [#allocation3], %s14
      %s16 = smul.addr %s12, 128
      %s17 = scalar_lea.hbm %s0, %s16
      %s18 = sshll.u32 [#allocation2], 4
      %s19 = int_to_ptr.vmem [resolvable:$true] %s18
      %24 = dma.hbm_to_vmem [thread:$0]  %s17, 512, %s19, [#allocation3], 128, 128, 8
    $region5: #{tpu_custom_call.1} parent=1 // pred_fallthru
      _
    // Predicated region
    $region6: #{tpu_custom_call.1} parent=1 // pred_check
      _
    $region7: #{tpu_custom_call.1} parent=1 // pred_check_branch
      %26 = sbr.rel (0) target = $region9
    $region8: #{tpu_custom_call.1} parent=1 // pred_region
      %s27 = sadd.s32 0, 0
      %s29 = ssub.s32 512, 512
      %30 = vsyncadd [#allocation6], %s29
      %s31 = smul.addr %s27, 128
      %s32 = scalar_lea.hbm %s1, %s31
      %s33 = sshll.u32 [#allocation5], 4
      %s34 = int_to_ptr.vmem [resolvable:$true] %s33
      %39 = dma.hbm_to_vmem [thread:$0]  %s32, 512, %s34, [#allocation6], 128, 128, 8
    $region9: #{tpu_custom_call.1} parent=1 // pred_fallthru
      _
    // Predicated region
    $region10: #{tpu_custom_call.1} parent=1 // pred_check
      _
    $region11: #{tpu_custom_call.1} parent=1 // pred_check_branch
      %41 = sbr.rel (0) target = $region13
    $region12: #{tpu_custom_call.1} parent=1 // pred_region
      %42 = dma.done [#allocation3], 512
    $region13: #{tpu_custom_call.1} parent=1 // pred_fallthru
      _
    // Predicated region
    $region14: #{tpu_custom_call.1} parent=1 // pred_check
      _
    $region15: #{tpu_custom_call.1} parent=1 // pred_check_branch
      %44 = sbr.rel (0) target = $region17
    $region16: #{tpu_custom_call.1} parent=1 // pred_region
      %45 = dma.done [#allocation6], 512
    $region17: #{tpu_custom_call.1} parent=1 // pred_fallthru
      _
    %s46 = sadd.s32 0, 0
    %s47 = sadd.s32 0, 0
    %p48 = scmp.eq.s32.totalorder 0, 0
    // Predicated region
    $region18: #{tpu_custom_call.1} parent=1 // pred_check
      %p49 = pneg %p48
    $region19: #{tpu_custom_call.1} parent=1 // pred_check_branch
      %51 = sbr.rel (%p49) target = $region21
    $region20: #{tpu_custom_call.1} parent=1 // pred_region
      %52 = vst [vmem:[#allocation7] sm:$0xff] 0.0
      %53 = vst [vmem:[#allocation7 + $0x8] sm:$0xff] 0.0
      %54 = vst [vmem:[#allocation7 + $0x10] sm:$0xff] 0.0
      %55 = vst [vmem:[#allocation7 + $0x18] sm:$0xff] 0.0
    $region21: #{tpu_custom_call.1} parent=1 // pred_fallthru
      _
    %v56 = vld [vmem:[#allocation2] sm:$0xff]
    %v57 = vld [vmem:[#allocation2 + $0x8] sm:$0xff]
    %v58 = vld [vmem:[#allocation2 + $0x10] sm:$0xff]
    %v59 = vld [vmem:[#allocation2 + $0x18] sm:$0xff]
    %v60 = vld [vmem:[#allocation5] sm:$0xff]
    %v61 = vld [vmem:[#allocation5 + $0x8] sm:$0xff]
    %v62 = vld [vmem:[#allocation5 + $0x10] sm:$0xff]
    %v63 = vld [vmem:[#allocation5 + $0x18] sm:$0xff]
    %v64 = vsub.f32 %v56, %v60
    %v65 = vsub.f32 %v57, %v61
    %v66 = vsub.f32 %v58, %v62
    %v67 = vsub.f32 %v59, %v63
    %v68 = vmul.f32 %v64, %v64
    %v69 = vmul.f32 %v65, %v65
    %v70 = vmul.f32 %v66, %v66
    %v71 = vmul.f32 %v67, %v67
    %v72 = vld [vmem:[#allocation7] sm:$0xff]
    %v73 = vld [vmem:[#allocation7 + $0x8] sm:$0xff]
    %v74 = vld [vmem:[#allocation7 + $0x10] sm:$0xff]
    %v75 = vld [vmem:[#allocation7 + $0x18] sm:$0xff]
    %v76 = vadd.f32 %v72, %v68
    %v77 = vadd.f32 %v73, %v69
    %v78 = vadd.f32 %v74, %v70
    %v79 = vadd.f32 %v75, %v71
    %80 = vst [vmem:[#allocation7] sm:$0xff] %v76
    %81 = vst [vmem:[#allocation7 + $0x8] sm:$0xff] %v77
    %82 = vst [vmem:[#allocation7 + $0x10] sm:$0xff] %v78
    %83 = vst [vmem:[#allocation7 + $0x18] sm:$0xff] %v79
    // Predicated region
    $region22: #{tpu_custom_call.1} parent=1 // pred_check
      _
    $region23: #{tpu_custom_call.1} parent=1 // pred_check_branch
      %85 = sbr.rel (0) target = $region25
    $region24: #{tpu_custom_call.1} parent=1 // pred_region
      %s87 = ssub.s32 512, 512
      %88 = vsyncadd [#allocation4], %s87
      %s89 = sshll.u32 [#allocation7], 4
      %s90 = int_to_ptr.vmem [resolvable:$true] %s89
      %95 = dma.vmem_to_hbm [thread:$0]  %s90, 512, %s2, [#allocation4], 128, 128, 8
    $region25: #{tpu_custom_call.1} parent=1 // pred_fallthru
      _
    // Predicated region
    $region26: #{tpu_custom_call.1} parent=1 // pred_check
      _
    $region27: #{tpu_custom_call.1} parent=1 // pred_check_branch
      %97 = sbr.rel (0) target = $region29
    $region28: #{tpu_custom_call.1} parent=1 // pred_region
      %98 = dma.done [#allocation4], 512
    $region29: #{tpu_custom_call.1} parent=1 // pred_fallthru
      _
    %99 = vsyncpa [#allocation3], 1
    %100 = vsyncpa [#allocation6], 1
    %101 = vsyncpa [#allocation4], 1

</llo_original>
